<compile_context>
chip_gen: v5e
topology: v5e:2x2
jax: 0.10.0
libtpu: 0.0.40
codegen_flags: <defaults>
</compile_context>

<pallas_src>
import functools

import jax
import jax.numpy as jnp
from jax.experimental import pallas as pl
from jax.experimental.pallas import tpu as pltpu


def _round_up(n, m):
    return ((n + m - 1) // m) * m


def _pick_block_b(B, block_b):
    """Batch elements per grid step.

    * keep >= 2 grid steps when B >= 2 (v7x shards the 'parallel' axis over its
      2 TensorCores; a 1-step grid would idle half the chip),
    * prefer an nb that divides B exactly, so no batch padding and no wrapper
      output-slice copy is needed (the kernel is writeback-bound).
    """
    cap = max(1, min(block_b, (B + 1) // 2))
    lo = max(1, cap // 2)
    for cand in range(cap, lo - 1, -1):
        if B % cand == 0:
            return cand
    return cap


def _te_kernel(x_ref, wc_ref, wpt_ref, bias_ref, g_ref, b_ref, o_ref, *, eps):
    # x_ref:   (NB, C, E)  f32   per-step batch slab (unpadded; cast in-kernel)
    # wc_ref:  (Tp, C)     bf16  Conv1d k=1 weight, rows zero-padded T -> Tp
    # wpt_ref: (E, D)      bf16  Linear weight, pre-transposed
    # bias_ref:(Tp, D)     f32   rowsum(Wc) (x) bp + bc   (folded biases)
    # g_ref:   (1, D)      f32   LayerNorm gamma
    # b_ref:   (1, D)      f32   LayerNorm beta
    # o_ref:   (NB, Tp, D)       output slab (f32 or bf16)
    nb, c, e = x_ref.shape
    tp = wc_ref.shape[0]
    d = wpt_ref.shape[1]

    # f32 -> bf16 cast of x happens here (cheap VPU work hidden under MXU slack).
    x = x_ref[...].astype(jnp.bfloat16)                       # (NB, C, E)
    wc = jnp.broadcast_to(wc_ref[...][None], (nb, tp, c))     # (NB, Tp, C)

    # Stage 1: channel mix (Conv1d kernel_size=1) as ONE batched MXU contraction
    # (standard batched dot_general -- no per-n dot list, no concatenate copy).
    u = jnp.einsum('ntc,nce->nte', wc, x,
                   preferred_element_type=jnp.float32)        # (NB, Tp, E) f32
    u = u.astype(jnp.bfloat16).reshape(nb * tp, e)            # free: Tp % 16 == 0

    # Stage 2: shared projection over all NB*Tp rows at once (big MXU matmul).
    z = jnp.dot(u, wpt_ref[...],
                preferred_element_type=jnp.float32)           # (NB*Tp, D) f32
    z = z.reshape(nb, tp, d) + bias_ref[...][None]            # (NB, Tp, D)

    # Stage 3: LayerNorm over D, single-pass statistics (E[z^2]-mean^2, clamped;
    # slightly less stable than two-pass, covered by the test tolerance).
    mean = jnp.mean(z, axis=-1, keepdims=True)
    meansq = jnp.mean(z * z, axis=-1, keepdims=True)
    var = jnp.maximum(meansq - mean * mean, 0.0)
    zn = (z - mean) * jax.lax.rsqrt(var + eps)
    out = zn * g_ref[...][None] + b_ref[...][None]            # (NB, Tp, D)

    # Full Tp-padded slab store: lane-dense, unmasked vst (T slice happens in XLA).
    o_ref[...] = out.astype(o_ref.dtype)


def prepare_te_params(params):
    """One-time weight-side prep (pad / transpose / bf16 cast / bias folding).

    Call once at init; the per-forward-call XLA path is then just the
    pallas_call (plus an optional batch pad / output slice).
    """
    wp = jnp.asarray(params["proj_w"], jnp.float32)     # (D, E)  nn.Linear weight
    bp = jnp.asarray(params["proj_b"], jnp.float32)     # (D,)
    wc = jnp.asarray(params["conv_w"], jnp.float32)     # (T, C)  Conv1d k=1 weight
    bc = jnp.asarray(params["conv_b"], jnp.float32)     # (T,)
    gamma = jnp.asarray(params["ln_w"], jnp.float32)    # (D,)
    beta = jnp.asarray(params["ln_b"], jnp.float32)     # (D,)
    D, E = wp.shape
    T, C = wc.shape

    # Tp multiple of 16: bf16 packs 16 rows per sublane group -> layout-free
    # in-kernel reshape and unmasked output stores.  (C is intentionally left
    # unpadded: x stays unpadded in HBM and C is only the tiny stage-1 K dim.)
    Tp = _round_up(T, 16)
    wc_p = jnp.pad(wc, ((0, Tp - T), (0, 0)))                        # (Tp, C)
    # Fold the Linear bias through the conv:  rowsum(Wc) (x) bp + bc.
    bias2d = (jnp.sum(wc_p, axis=1, keepdims=True) * bp[None, :]
              + jnp.pad(bc, (0, Tp - T))[:, None])                   # (Tp, D)

    return {
        "wc_b": wc_p.astype(jnp.bfloat16),          # (Tp, C) bf16
        "wpt_b": wp.T.astype(jnp.bfloat16),         # (E, D)  bf16, pre-transposed
        "bias2d": bias2d,                           # (Tp, D) f32
        "g2": gamma.reshape(1, D),                  # (1, D)  f32
        "b2": beta.reshape(1, D),                   # (1, D)  f32
        "C": C, "E": E, "D": D, "T": T, "Tp": Tp,
    }


def te_model_forward(x, prepared, *, eps=1e-5, block_b=16, out_dtype=jnp.float32):
    """x: (B, C, E) float32.  Returns (B, T, D) in `out_dtype`.

    out_dtype=jnp.bfloat16 halves HBM writeback (the kernel is store-bound);
    use it whenever the consumer tolerates bf16.  block_b can be raised to ~32
    on v5e/v6e (128 MiB VMEM); default 16 respects the v7x 32 MiB scoped budget.
    """
    B, C, E = x.shape
    assert C == prepared["C"] and E == prepared["E"], (x.shape, prepared["C"], prepared["E"])
    T, D, Tp = prepared["T"], prepared["D"], prepared["Tp"]

    nb = _pick_block_b(B, block_b)
    Bp = _round_up(B, nb)
    if Bp != B:
        x = jnp.pad(x, ((0, Bp - B), (0, 0), (0, 0)))

    kernel = functools.partial(_te_kernel, eps=eps)

    out = pl.pallas_call(
        kernel,
        out_shape=jax.ShapeDtypeStruct((Bp, Tp, D), out_dtype),
        grid_spec=pltpu.PrefetchScalarGridSpec(
            num_scalar_prefetch=0,
            grid=(Bp // nb,),
            in_specs=[
                # x stays f32 & unpadded in HBM; block == full (C, E) dims is legal.
                pl.BlockSpec((nb, C, E), lambda b: (b, 0, 0)),
                # Grid-invariant operands (constant index_map -> fetched once and
                # re-used).  VMEM is ample at these sizes, so default buffering is
                # fine; single-buffer (pl.Buffered(1)) only if nb is pushed toward
                # the v7x VMEM limit.
                pl.BlockSpec((Tp, C), lambda b: (0, 0)),     # conv weight
                pl.BlockSpec((E, D), lambda b: (0, 0)),      # proj weight^T
                pl.BlockSpec((Tp, D), lambda b: (0, 0)),     # folded biases
                pl.BlockSpec((1, D), lambda b: (0, 0)),      # ln gamma
                pl.BlockSpec((1, D), lambda b: (0, 0)),      # ln beta
            ],
            out_specs=pl.BlockSpec((nb, Tp, D), lambda b: (b, 0, 0)),
        ),
        compiler_params=pltpu.CompilerParams(
            dimension_semantics=("parallel",),
            # Budgeted for v7x (64 MiB physical / 32 MiB scoped); widen on
            # v5e/v6e if block_b is raised.
            vmem_limit_bytes=32 * 1024 * 1024),
    )(x, prepared["wc_b"], prepared["wpt_b"], prepared["bias2d"],
      prepared["g2"], prepared["b2"])

    if Bp != B or Tp != T:
        out = out[:B, :T]
    return out


def init_params(key, embedding_dim, proj_clip_dim, channels, clip_text_dim):
    ks = jax.random.split(key, 4)
    # deterministic synthetic init (not a checkpoint load)
    proj_w = jax.random.normal(ks[0], (proj_clip_dim, embedding_dim),
                               jnp.float32) * (1.0 / jnp.sqrt(embedding_dim))
    proj_b = jax.random.normal(ks[1], (proj_clip_dim,), jnp.float32) * 0.01
    conv_w = jax.random.normal(ks[2], (clip_text_dim, channels),
                               jnp.float32) * (1.0 / jnp.sqrt(channels))
    conv_b = jax.random.normal(ks[3], (clip_text_dim,), jnp.float32) * 0.01
    ln_w = jnp.ones((proj_clip_dim,), jnp.float32)
    ln_b = jnp.zeros((proj_clip_dim,), jnp.float32)
    return {"proj_w": proj_w, "proj_b": proj_b,
            "conv_w": conv_w, "conv_b": conv_b,
            "ln_w": ln_w, "ln_b": ln_b}


def reference_forward(x, params, eps=1e-5):
    hp = jax.lax.Precision.HIGHEST
    y = jnp.einsum("bce,de->bcd", x, params["proj_w"],
                   precision=hp) + params["proj_b"]
    z = jnp.einsum("tc,bcd->btd", params["conv_w"], y,
                   precision=hp) + params["conv_b"][None, :, None]
    mean = jnp.mean(z, axis=-1, keepdims=True)
    var = jnp.mean(jnp.square(z - mean), axis=-1, keepdims=True)
    zn = (z - mean) * jax.lax.rsqrt(var + eps)
    return zn * params["ln_w"] + params["ln_b"]


if __name__ == "__main__":
    # Small shapes consistent with the module's structure
    # (module defaults: E=100, D=768, C=63, T=77).
    B = 16                # batch (2 grid steps with nb=8)
    C = 8                 # channels
    E = 32                # embedding_dim
    D = 128               # proj_clip_dim
    T = 16                # clip_text_dim

    key = jax.random.PRNGKey(0)
    kx, kp = jax.random.split(key)
    x = jax.random.normal(kx, (B, C, E), jnp.float32)
    subject_id = jnp.zeros((B,), jnp.int32)  # unused by forward (as in PyTorch)
    params = init_params(kp, E, D, C, T)

    prepared = prepare_te_params(params)     # one-time weight prep (hoisted)

    out = te_model_forward(x, prepared)
    jax.block_until_ready(out)

    ref = reference_forward(x, params)
    assert out.shape == (B, T, D), out.shape
    err = float(jnp.max(jnp.abs(out - ref)))
    scale = float(jnp.max(jnp.abs(ref)))
    # bf16 matmul operands with f32 accumulation -> relaxed tolerance vs f32 ref
    assert err < 3e-2 * scale + 1e-3, (err, scale)

    # bf16-output path (halves HBM writeback on the store-bound kernel)
    out_bf16 = te_model_forward(x, prepared, out_dtype=jnp.bfloat16)
    jax.block_until_ready(out_bf16)
    assert out_bf16.shape == (B, T, D) and out_bf16.dtype == jnp.bfloat16
    err_bf = float(jnp.max(jnp.abs(out_bf16.astype(jnp.float32) - ref)))
    assert err_bf < 6e-2 * scale + 1e-2, (err_bf, scale)

    print("KERNEL_OK")
</pallas_src>

<mosaic_0001>
module attributes {stable_mosaic.version = 11 : i64} {
  func.func @_te_kernel(%arg0: i32, %arg1: memref<8x8x32xf32, #tpu.memory_space<vmem>>, %arg2: memref<16x8xbf16, #tpu.memory_space<vmem>>, %arg3: memref<32x128xbf16, #tpu.memory_space<vmem>>, %arg4: memref<16x128xf32, #tpu.memory_space<vmem>>, %arg5: memref<1x128xf32, #tpu.memory_space<vmem>>, %arg6: memref<1x128xf32, #tpu.memory_space<vmem>>, %arg7: memref<8x16x128xf32, #tpu.memory_space<vmem>>) attributes {dimension_semantics = [#tpu.dimension_semantics<parallel>], iteration_bounds = array<i64: 2>, scalar_prefetch = 0 : i64, scratch_operands = 0 : i64, tpu.core_type = #tpu.core_type<tc>, window_params = [{transform_indices = @transform_0, window_bounds = array<i64: 8, 8, 32>}, {pipeline_mode = #tpu.pipeline_mode<synchronous>, transform_indices = @transform_1, window_bounds = array<i64: 16, 8>}, {pipeline_mode = #tpu.pipeline_mode<synchronous>, transform_indices = @transform_2, window_bounds = array<i64: 32, 128>}, {pipeline_mode = #tpu.pipeline_mode<synchronous>, transform_indices = @transform_3, window_bounds = array<i64: 16, 128>}, {pipeline_mode = #tpu.pipeline_mode<synchronous>, transform_indices = @transform_4, window_bounds = array<i64: 1, 128>}, {pipeline_mode = #tpu.pipeline_mode<synchronous>, transform_indices = @transform_5, window_bounds = array<i64: 1, 128>}, {transform_indices = @transform_6, window_bounds = array<i64: 8, 16, 128>}]} {
    %c0 = arith.constant 0 : index
    %c0_0 = arith.constant 0 : index
    %c0_1 = arith.constant 0 : index
    %0 = vector.load %arg1[%c0, %c0_0, %c0_1] : memref<8x8x32xf32, #tpu.memory_space<vmem>>, vector<8x8x32xf32>
    %1 = arith.truncf %0 : vector<8x8x32xf32> to vector<8x8x32xbf16>
    %c0_2 = arith.constant 0 : index
    %c0_3 = arith.constant 0 : index
    %2 = vector.load %arg2[%c0_2, %c0_3] : memref<16x8xbf16, #tpu.memory_space<vmem>>, vector<16x8xbf16>
    %3 = vector.shape_cast %2 : vector<16x8xbf16> to vector<1x16x8xbf16>
    %4 = vector.shape_cast %3 : vector<1x16x8xbf16> to vector<1x16x8xbf16>
    %5 = vector.broadcast %4 : vector<1x16x8xbf16> to vector<8x16x8xbf16>
    "tpu.trace_start"() <{level = 10 : i32, message = "ntc,nce->nte"}> : () -> ()
    %cst = arith.constant dense<0.000000e+00> : vector<8x16x32xf32>
    %6 = tpu.matmul %5, %1, %cst {dimension_numbers = #tpu.dot_dimension_numbers<[2], [1], [1], [2], [0, 0, 0, 1, 1, 2], [0], [0]>} : vector<8x16x8xbf16>, vector<8x8x32xbf16>, vector<8x16x32xf32> -> vector<8x16x32xf32>
    "tpu.trace_stop"() : () -> ()
    %7 = arith.truncf %6 : vector<8x16x32xf32> to vector<8x16x32xbf16>
    %8 = vector.shape_cast %7 : vector<8x16x32xbf16> to vector<128x32xbf16>
    %c0_4 = arith.constant 0 : index
    %c0_5 = arith.constant 0 : index
    %9 = vector.load %arg3[%c0_4, %c0_5] : memref<32x128xbf16, #tpu.memory_space<vmem>>, vector<32x128xbf16>
    %cst_6 = arith.constant dense<0.000000e+00> : vector<128x128xf32>
    %10 = tpu.matmul %8, %9, %cst_6 {dimension_numbers = #tpu.dot_dimension_numbers<[1], [0], [0], [1], [0, 0, 1, 1], [], []>} : vector<128x32xbf16>, vector<32x128xbf16>, vector<128x128xf32> -> vector<128x128xf32>
    %11 = vector.shape_cast %10 : vector<128x128xf32> to vector<8x16x128xf32>
    %c0_7 = arith.constant 0 : index
    %c0_8 = arith.constant 0 : index
    %12 = vector.load %arg4[%c0_7, %c0_8] : memref<16x128xf32, #tpu.memory_space<vmem>>, vector<16x128xf32>
    %13 = vector.shape_cast %12 : vector<16x128xf32> to vector<1x16x128xf32>
    %14 = vector.broadcast %13 : vector<1x16x128xf32> to vector<8x16x128xf32>
    %15 = arith.addf %11, %14 : vector<8x16x128xf32>
    %cst_9 = arith.constant dense<0.000000e+00> : vector<8x16xf32>
    %16 = vector.multi_reduction <add>, %15, %cst_9 [2] : vector<8x16x128xf32> to vector<8x16xf32>
    %17 = vector.shape_cast %16 : vector<8x16xf32> to vector<8x16x1xf32>
    %cst_10 = arith.constant 1.280000e+02 : f32
    %18 = vector.broadcast %cst_10 : f32 to vector<8x16x1xf32>
    %19 = arith.divf %17, %18 : vector<8x16x1xf32>
    %20 = arith.mulf %15, %15 : vector<8x16x128xf32>
    %cst_11 = arith.constant dense<0.000000e+00> : vector<8x16xf32>
    %21 = vector.multi_reduction <add>, %20, %cst_11 [2] : vector<8x16x128xf32> to vector<8x16xf32>
    %22 = vector.shape_cast %21 : vector<8x16xf32> to vector<8x16x1xf32>
    %cst_12 = arith.constant 1.280000e+02 : f32
    %23 = vector.broadcast %cst_12 : f32 to vector<8x16x1xf32>
    %24 = arith.divf %22, %23 : vector<8x16x1xf32>
    %25 = arith.mulf %19, %19 : vector<8x16x1xf32>
    %26 = arith.subf %24, %25 : vector<8x16x1xf32>
    %cst_13 = arith.constant 0.000000e+00 : f32
    %27 = vector.broadcast %cst_13 : f32 to vector<8x16x1xf32>
    %28 = arith.maximumf %26, %27 : vector<8x16x1xf32>
    %29 = vector.broadcast %19 : vector<8x16x1xf32> to vector<8x16x128xf32>
    %30 = arith.subf %15, %29 : vector<8x16x128xf32>
    %cst_14 = arith.constant 9.99999974E-6 : f32
    %31 = vector.broadcast %cst_14 : f32 to vector<8x16x1xf32>
    %32 = arith.addf %28, %31 : vector<8x16x1xf32>
    %33 = math.rsqrt %32 : vector<8x16x1xf32>
    %34 = vector.broadcast %33 : vector<8x16x1xf32> to vector<8x16x128xf32>
    %35 = arith.mulf %30, %34 : vector<8x16x128xf32>
    %c0_15 = arith.constant 0 : index
    %c0_16 = arith.constant 0 : index
    %36 = vector.load %arg5[%c0_15, %c0_16] : memref<1x128xf32, #tpu.memory_space<vmem>>, vector<1x128xf32>
    %37 = vector.shape_cast %36 : vector<1x128xf32> to vector<1x1x128xf32>
    %38 = vector.broadcast %37 : vector<1x1x128xf32> to vector<8x16x128xf32>
    %39 = arith.mulf %35, %38 : vector<8x16x128xf32>
    %c0_17 = arith.constant 0 : index
    %c0_18 = arith.constant 0 : index
    %40 = vector.load %arg6[%c0_17, %c0_18] : memref<1x128xf32, #tpu.memory_space<vmem>>, vector<1x128xf32>
    %41 = vector.shape_cast %40 : vector<1x128xf32> to vector<1x1x128xf32>
    %42 = vector.broadcast %41 : vector<1x1x128xf32> to vector<8x16x128xf32>
    %43 = arith.addf %39, %42 : vector<8x16x128xf32>
    %c0_19 = arith.constant 0 : index
    %c0_20 = arith.constant 0 : index
    %c0_21 = arith.constant 0 : index
    %44 = vector.load %arg7[%c0_19, %c0_20, %c0_21] : memref<8x16x128xf32, #tpu.memory_space<vmem>>, vector<8x16x128xf32>
    tpu.vector_store %arg7[%c0_19, %c0_20, %c0_21], %43 {strides = array<i32>} : memref<8x16x128xf32, #tpu.memory_space<vmem>>, vector<8x16x128xf32>,
    return
  }
  func.func @transform_0(%arg0: i32) -> (i32, i32, i32) {
    %c0_i32 = arith.constant 0 : i32
    %c0_i32_0 = arith.constant 0 : i32
    %c0_i32_1 = arith.constant 0 : i32
    return %arg0, %c0_i32, %c0_i32_0 : i32, i32, i32
  }
  func.func @transform_1(%arg0: i32) -> (i32, i32) {
    %c0_i32 = arith.constant 0 : i32
    %c0_i32_0 = arith.constant 0 : i32
    %c0_i32_1 = arith.constant 0 : i32
    return %c0_i32, %c0_i32_0 : i32, i32
  }
  func.func @transform_2(%arg0: i32) -> (i32, i32) {
    %c0_i32 = arith.constant 0 : i32
    %c0_i32_0 = arith.constant 0 : i32
    %c0_i32_1 = arith.constant 0 : i32
    return %c0_i32, %c0_i32_0 : i32, i32
  }
  func.func @transform_3(%arg0: i32) -> (i32, i32) {
    %c0_i32 = arith.constant 0 : i32
    %c0_i32_0 = arith.constant 0 : i32
    %c0_i32_1 = arith.constant 0 : i32
    return %c0_i32, %c0_i32_0 : i32, i32
  }
  func.func @transform_4(%arg0: i32) -> (i32, i32) {
    %c0_i32 = arith.constant 0 : i32
    %c0_i32_0 = arith.constant 0 : i32
    %c0_i32_1 = arith.constant 0 : i32
    return %c0_i32, %c0_i32_0 : i32, i32
  }
  func.func @transform_5(%arg0: i32) -> (i32, i32) {
    %c0_i32 = arith.constant 0 : i32
    %c0_i32_0 = arith.constant 0 : i32
    %c0_i32_1 = arith.constant 0 : i32
    return %c0_i32, %c0_i32_0 : i32, i32
  }
  func.func @transform_6(%arg0: i32) -> (i32, i32, i32) {
    %c0_i32 = arith.constant 0 : i32
    %c0_i32_0 = arith.constant 0 : i32
    %c0_i32_1 = arith.constant 0 : i32
    return %arg0, %c0_i32, %c0_i32_0 : i32, i32, i32
  }
}

</mosaic_0001>

<llo_original>
// kernel: tpu_custom_call.1
$region0: #{tpu_custom_call.1}
  #allocation0 [shape = 'u32[]', space=smem, size = 0x4, offset = 0x4, fixed_abs, tag = 'smem constant byte address 0x4 - core index']
  #allocation1 [shape = 'u32[72,128]{1,0:T(1,128)}', space=vmem, size = 0x9000, scoped, tag = 'internal scratch']
  %s0 = inlined_call_operand.hbm [shape: f32[16,8,32], index: 0, kind: input, shape index: {}]
  %s1 = inlined_call_operand.vmem [shape: bf16[16,8], index: 1, kind: input, shape index: {}]
  %s2 = inlined_call_operand.hbm [shape: bf16[32,128], index: 2, kind: input, shape index: {}]
  %s3 = inlined_call_operand.hbm [shape: f32[16,128], index: 3, kind: input, shape index: {}]
  %s4 = inlined_call_operand.vmem [shape: f32[1,128], index: 4, kind: input, shape index: {}]
  %s5 = inlined_call_operand.vmem [shape: f32[1,128], index: 5, kind: input, shape index: {}]
  %s6 = inlined_call_operand.hbm [shape: f32[16,16,128], index: 6, kind: output, shape index: {}]
  %s7 = sld [smem:[#allocation0]]
  $region69: #{tpu_custom_call.1} parent=0
    _
  %s9 = ssub.s32 1, %s7
  %s10 = scalar_select 0, %s9, %s7
  $region1: #{tpu_custom_call.1} parent=0
    #allocation2 [shape = 'u8[65536]{0}', space=vmem, size = 0x10000, scoped, tag = 'input window, operand 0']
    #allocation3 [shape = 's32[2]{0}', space=sflag, size = 0x8, scoped, tag = 'scoped memory for tpu_custom_call.1']
    #allocation4 [shape = 's32[2]{0}', space=sflag, size = 0x8, scoped, tag = 'scoped memory for tpu_custom_call.1']
    #allocation5 [shape = 'u8[8192]{0}', space=vmem, size = 0x2000, scoped, tag = 'input window, operand 2, single buffered']
    #allocation6 [shape = 's32[1]{0}', space=sflag, size = 0x4, scoped, tag = 'scoped memory for tpu_custom_call.1']
    #allocation7 [shape = 'u8[8192]{0}', space=vmem, size = 0x2000, scoped, tag = 'input window, operand 3, single buffered']
    #allocation8 [shape = 'u8[131072]{0}', space=vmem, size = 0x20000, scoped, tag = 'output window, operand 0']
    %11 = vsyncpa [#allocation3], 0
    %s12 = scalar_lea.sflag [#allocation3], 1
    %13 = vsyncpa %s12, 0
    %14 = vsyncpa [#allocation6], 0
    %15 = vsyncpa [#allocation4], 0
    %s16 = scalar_lea.sflag [#allocation4], 1
    %17 = vsyncpa %s16, 0
    loop: start=0, step=1, limit=4
    $region2: #{tpu_custom_call.1} parent=1 // loop_pre_header
      _
    $region3: #{tpu_custom_call.1} parent=1 // loop_header
      %s19 = sphi 0, %s23
      %p20 = scmp.ge.s32.totalorder %s19, 4
      %s29 = sphi 0, %s31
      %s32 = sphi 0, %s29
      %s33 = sphi 0, %s32
      %s49 = sphi 0, %s33
      %s53 = sphi 0, %s53
      %s55 = sphi 0, %s53
      %s56 = sphi 0, %s55
      %s70 = sphi 0, %s56
      %s74 = sphi 0, %s74
      %s76 = sphi 0, %s74
      %s77 = sphi 0, %s76
      %s91 = sphi 0, %s77
      %s95 = sphi 0, %s95
      %s97 = sphi 0, %s95
      %s98 = sphi 0, %s97
      %s112 = sphi 0, %s98
      %s116 = sphi 0, %s116
      %s118 = sphi 0, %s116
      %s119 = sphi 0, %s118
      %s133 = sphi 0, %s119
      %s137 = sphi 0, %s137
      %s139 = sphi 0, %s137
      %s140 = sphi 0, %s139
      %s154 = sphi 0, %s140
      %s160 = sphi 0, %s162
      %s163 = sphi 0, %s160
      %s164 = sphi 0, %s163
      %s180 = sphi 0, %s164
    $region4: #{tpu_custom_call.1} parent=1 // loop_header_branch
      %22 = sbr.rel (%p20) target = $region8
    $region5: #{tpu_custom_call.1} parent=1 // loop_body
      %s24 = ssub.s32 %s19, 1
      %s25 = ssub.s32 %s19, 2
      %s26 = sadd.s32 %s19, 1
      %s27 = ssub.s32 %s19, %s26
      %p28 = scmp.eq.s32.totalorder %s27, 0
      %s30 = sadd.s32 %s29, 1
      %s31 = scalar_select %p28, %s29, %s30
      %p34 = pneg %p28
      %p35 = scmp.eq.s32.totalorder %s19, 1
      %p36 = por %p34, %p35
      %p37 = scmp.ne.s32.totalorder %s29, %s32
      %p38 = scmp.eq.s32.totalorder %s19, 0
      %p39 = por %p37, %p38
      %p40 = scmp.ne.s32.totalorder %s29, %s32
      %p41 = scmp.eq.s32.totalorder %s24, 1
      %p42 = por %p40, %p41
      %p43 = scmp.ne.s32.totalorder %s32, %s33
      %p44 = scmp.eq.s32.totalorder %s24, 0
      %p45 = por %p43, %p44
      %p46 = scmp.ne.s32.totalorder %s32, %s33
      %p47 = scmp.eq.s32.totalorder %s25, 1
      %p48 = por %p46, %p47
      %p50 = scmp.ne.s32.totalorder %s33, %s49
      %p51 = scmp.eq.s32.totalorder %s25, 0
      %p52 = por %p50, %p51
      %s54 = sadd.s32 %s53, 1
      %p57 = scmp.eq.s32.totalorder %s19, 1
      %p58 = scmp.ne.s32.totalorder %s53, %s55
      %p59 = scmp.eq.s32.totalorder %s19, 0
      %p60 = por %p58, %p59
      %p61 = scmp.ne.s32.totalorder %s53, %s55
      %p62 = scmp.eq.s32.totalorder %s24, 1
      %p63 = por %p61, %p62
      %p64 = scmp.ne.s32.totalorder %s55, %s56
      %p65 = scmp.eq.s32.totalorder %s24, 0
      %p66 = por %p64, %p65
      %p67 = scmp.ne.s32.totalorder %s55, %s56
      %p68 = scmp.eq.s32.totalorder %s25, 1
      %p69 = por %p67, %p68
      %p71 = scmp.ne.s32.totalorder %s56, %s70
      %p72 = scmp.eq.s32.totalorder %s25, 0
      %p73 = por %p71, %p72
      %s75 = sadd.s32 %s74, 1
      %p78 = scmp.eq.s32.totalorder %s19, 1
      %p79 = scmp.ne.s32.totalorder %s74, %s76
      %p80 = scmp.eq.s32.totalorder %s19, 0
      %p81 = por %p79, %p80
      %p82 = scmp.ne.s32.totalorder %s74, %s76
      %p83 = scmp.eq.s32.totalorder %s24, 1
      %p84 = por %p82, %p83
      %p85 = scmp.ne.s32.totalorder %s76, %s77
      %p86 = scmp.eq.s32.totalorder %s24, 0
      %p87 = por %p85, %p86
      %p88 = scmp.ne.s32.totalorder %s76, %s77
      %p89 = scmp.eq.s32.totalorder %s25, 1
      %p90 = por %p88, %p89
      %p92 = scmp.ne.s32.totalorder %s77, %s91
      %p93 = scmp.eq.s32.totalorder %s25, 0
      %p94 = por %p92, %p93
      %s96 = sadd.s32 %s95, 1
      %p99 = scmp.eq.s32.totalorder %s19, 1
      %p100 = scmp.ne.s32.totalorder %s95, %s97
      %p101 = scmp.eq.s32.totalorder %s19, 0
      %p102 = por %p100, %p101
      %p103 = scmp.ne.s32.totalorder %s95, %s97
      %p104 = scmp.eq.s32.totalorder %s24, 1
      %p105 = por %p103, %p104
      %p106 = scmp.ne.s32.totalorder %s97, %s98
      %p107 = scmp.eq.s32.totalorder %s24, 0
      %p108 = por %p106, %p107
      %p109 = scmp.ne.s32.totalorder %s97, %s98
      %p110 = scmp.eq.s32.totalorder %s25, 1
      %p111 = por %p109, %p110
      %p113 = scmp.ne.s32.totalorder %s98, %s112
      %p114 = scmp.eq.s32.totalorder %s25, 0
      %p115 = por %p113, %p114
      %s117 = sadd.s32 %s116, 1
      %p120 = scmp.eq.s32.totalorder %s19, 1
      %p121 = scmp.ne.s32.totalorder %s116, %s118
      %p122 = scmp.eq.s32.totalorder %s19, 0
      %p123 = por %p121, %p122
      %p124 = scmp.ne.s32.totalorder %s116, %s118
      %p125 = scmp.eq.s32.totalorder %s24, 1
      %p126 = por %p124, %p125
      %p127 = scmp.ne.s32.totalorder %s118, %s119
      %p128 = scmp.eq.s32.totalorder %s24, 0
      %p129 = por %p127, %p128
      %p130 = scmp.ne.s32.totalorder %s118, %s119
      %p131 = scmp.eq.s32.totalorder %s25, 1
      %p132 = por %p130, %p131
      %p134 = scmp.ne.s32.totalorder %s119, %s133
      %p135 = scmp.eq.s32.totalorder %s25, 0
      %p136 = por %p134, %p135
      %s138 = sadd.s32 %s137, 1
      %p141 = scmp.eq.s32.totalorder %s19, 1
      %p142 = scmp.ne.s32.totalorder %s137, %s139
      %p143 = scmp.eq.s32.totalorder %s19, 0
      %p144 = por %p142, %p143
      %p145 = scmp.ne.s32.totalorder %s137, %s139
      %p146 = scmp.eq.s32.totalorder %s24, 1
      %p147 = por %p145, %p146
      %p148 = scmp.ne.s32.totalorder %s139, %s140
      %p149 = scmp.eq.s32.totalorder %s24, 0
      %p150 = por %p148, %p149
      %p151 = scmp.ne.s32.totalorder %s139, %s140
      %p152 = scmp.eq.s32.totalorder %s25, 1
      %p153 = por %p151, %p152
      %p155 = scmp.ne.s32.totalorder %s140, %s154
      %p156 = scmp.eq.s32.totalorder %s25, 0
      %p157 = por %p155, %p156
      %s158 = ssub.s32 %s19, %s26
      %p159 = scmp.eq.s32.totalorder %s158, 0
      %s161 = sadd.s32 %s160, 1
      %s162 = scalar_select %p159, %s160, %s161
      %p165 = pneg %p159
      %p166 = scmp.eq.s32.totalorder %s19, 1
      %p167 = por %p165, %p166
      %p168 = scmp.ne.s32.totalorder %s160, %s163
      %p169 = scmp.eq.s32.totalorder %s19, 0
      %p170 = por %p168, %p169
      %p171 = scmp.ne.s32.totalorder %s160, %s163
      %p172 = scmp.eq.s32.totalorder %s24, 1
      %p173 = por %p171, %p172
      %p174 = scmp.ne.s32.totalorder %s163, %s164
      %p175 = scmp.eq.s32.totalorder %s24, 0
      %p176 = por %p174, %p175
      %p177 = scmp.ne.s32.totalorder %s163, %s164
      %p178 = scmp.eq.s32.totalorder %s25, 1
      %p179 = por %p177, %p178
      %p181 = scmp.ne.s32.totalorder %s164, %s180
      %p182 = scmp.eq.s32.totalorder %s25, 0
      %p183 = por %p181, %p182
      %p184 = scmp.le.s32.totalorder 1, %s19
      %p185 = scmp.lt.s32.totalorder %s19, 3
      %p186 = pnand %p184, %p185
      %p187 = pneg %p186
      // Predicated region
      $region9: #{tpu_custom_call.1} parent=5 // pred_check
        _
      $region10: #{tpu_custom_call.1} parent=5 // pred_check_branch
        %189 = sbr.rel (%p186) target = $region12
      $region11: #{tpu_custom_call.1} parent=5 // pred_region
        %s190 = ssub.s32 %s19, 1
        // Predicated region
        $region13: #{tpu_custom_call.1} parent=11 // pred_check
          %p191 = pneg %p66
        $region14: #{tpu_custom_call.1} parent=11 // pred_check_branch
          %193 = sbr.rel (%p191) target = $region16
        $region15: #{tpu_custom_call.1} parent=11 // pred_region
          _
        $region16: #{tpu_custom_call.1} parent=11 // pred_fallthru
          _
        // Predicated region
        $region17: #{tpu_custom_call.1} parent=11 // pred_check
          %p194 = pneg %p87
        $region18: #{tpu_custom_call.1} parent=11 // pred_check_branch
          %196 = sbr.rel (%p194) target = $region20
        $region19: #{tpu_custom_call.1} parent=11 // pred_region
          %198 = vsyncadd [#allocation6], 0
          %s199 = sshll.u32 %s2, 4
          %s200 = int_to_ptr.hbm [resolvable:$true] %s199
          %s201 = sshll.u32 [#allocation5], 4
          %s202 = int_to_ptr.vmem [resolvable:$true] %s201
          %207 = dma.hbm_to_vmem [thread:$0]  %s200, 256, %s202, [#allocation6], 64, 64, 4
        $region20: #{tpu_custom_call.1} parent=11 // pred_fallthru
          _
        // Predicated region
        $region21: #{tpu_custom_call.1} parent=11 // pred_check
          %p208 = pneg %p108
        $region22: #{tpu_custom_call.1} parent=11 // pred_check_branch
          %210 = sbr.rel (%p208) target = $region24
        $region23: #{tpu_custom_call.1} parent=11 // pred_region
          %212 = vsyncadd [#allocation6], 0
          %s213 = sshll.u32 %s3, 4
          %s214 = int_to_ptr.hbm [resolvable:$true] %s213
          %s215 = sshll.u32 [#allocation7], 4
          %s216 = int_to_ptr.vmem [resolvable:$true] %s215
          %221 = dma.hbm_to_vmem [thread:$0]  %s214, 256, %s216, [#allocation6], 128, 128, 8
        $region24: #{tpu_custom_call.1} parent=11 // pred_fallthru
          _
        // Predicated region
        $region25: #{tpu_custom_call.1} parent=11 // pred_check
          %p222 = pneg %p129
        $region26: #{tpu_custom_call.1} parent=11 // pred_check_branch
          %224 = sbr.rel (%p222) target = $region28
        $region27: #{tpu_custom_call.1} parent=11 // pred_region
          _
        $region28: #{tpu_custom_call.1} parent=11 // pred_fallthru
          _
        // Predicated region
        $region29: #{tpu_custom_call.1} parent=11 // pred_check
          %p225 = pneg %p150
        $region30: #{tpu_custom_call.1} parent=11 // pred_check_branch
          %227 = sbr.rel (%p225) target = $region32
        $region31: #{tpu_custom_call.1} parent=11 // pred_region
          _
        $region32: #{tpu_custom_call.1} parent=11 // pred_fallthru
          _
      $region12: #{tpu_custom_call.1} parent=5 // pred_fallthru
        _
      %p228 = scmp.lt.s32.totalorder %s19, 2
      // Predicated region
      $region33: #{tpu_custom_call.1} parent=5 // pred_check
        %p229 = pneg %p228
      $region34: #{tpu_custom_call.1} parent=5 // pred_check_branch
        %231 = sbr.rel (%p229) target = $region36
      $region35: #{tpu_custom_call.1} parent=5 // pred_region
        // Predicated region
        $region37: #{tpu_custom_call.1} parent=35 // pred_check
          %p232 = pneg %p39
        $region38: #{tpu_custom_call.1} parent=35 // pred_check_branch
          %234 = sbr.rel (%p232) target = $region40
        $region39: #{tpu_custom_call.1} parent=35 // pred_region
          %s235 = sand.u32 %s29, 1
          %s236 = scalar_lea.sflag [#allocation3], %s235
          %s237 = sand.u32 %s29, 1
          %s238 = smul.addr %s237, 64
          %s239 = scalar_lea.vmem [#allocation2], %s238
          %s240 = smul.u32 8, %s19
          %242 = vsyncadd %s236, 0
          %s243 = smul.addr %s240, 8
          %s244 = scalar_lea.hbm %s0, %s243
          %s245 = sshll.u32 %s244, 4
          %s246 = int_to_ptr.hbm [resolvable:$true] %s245
          %s247 = sshll.u32 %s239, 4
          %s248 = int_to_ptr.vmem [resolvable:$true] %s247
          %253 = dma.hbm_to_vmem [thread:$0]  %s246, 1024, %s248, %s236, 128, 128, 8
        $region40: #{tpu_custom_call.1} parent=35 // pred_fallthru
          _
      $region36: #{tpu_custom_call.1} parent=5 // pred_fallthru
        _
      %p254 = scmp.le.s32.totalorder 1, %s19
      %p255 = scmp.lt.s32.totalorder %s19, 3
      %p256 = pnand %p254, %p255
      %p257 = pneg %p256
      // Predicated region
      $region41: #{tpu_custom_call.1} parent=5 // pred_check
        _
      $region42: #{tpu_custom_call.1} parent=5 // pred_check_branch
        %259 = sbr.rel (%p256) target = $region44
      $region43: #{tpu_custom_call.1} parent=5 // pred_region
        %s260 = ssub.s32 %s19, 1
        %s261 = sand.u32 %s32, 1
        %s262 = scalar_lea.sflag [#allocation3], %s261
        %s263 = sand.u32 %s32, 1
        %s264 = smul.addr %s263, 64
        %s265 = scalar_lea.vmem [#allocation2], %s264
        // Predicated region
        $region45: #{tpu_custom_call.1} parent=43 // pred_check
          %p266 = pneg %p45
        $region46: #{tpu_custom_call.1} parent=43 // pred_check_branch
          %268 = sbr.rel (%p266) target = $region48
        $region47: #{tpu_custom_call.1} parent=43 // pred_region
          %270 = dma.done %s262, 1024
        $region48: #{tpu_custom_call.1} parent=43 // pred_fallthru
          _
        // Predicated region
        $region49: #{tpu_custom_call.1} parent=43 // pred_check
          %p271 = pneg %p87
        $region50: #{tpu_custom_call.1} parent=43 // pred_check_branch
          %273 = sbr.rel (%p271) target = $region52
        $region51: #{tpu_custom_call.1} parent=43 // pred_region
          %275 = dma.done [#allocation6], 256
        $region52: #{tpu_custom_call.1} parent=43 // pred_fallthru
          _
        // Predicated region
        $region53: #{tpu_custom_call.1} parent=43 // pred_check
          %p276 = pneg %p108
        $region54: #{tpu_custom_call.1} parent=43 // pred_check_branch
          %278 = sbr.rel (%p276) target = $region56
        $region55: #{tpu_custom_call.1} parent=43 // pred_region
          %280 = dma.done [#allocation6], 256
        $region56: #{tpu_custom_call.1} parent=43 // pred_fallthru
          _
        %s281 = sand.u32 %s32, 1
        %s282 = scalar_lea.sflag [#allocation3], %s281
        %s283 = sand.u32 %s32, 1
        %s284 = smul.addr %s283, 64
        %s285 = scalar_lea.vmem [#allocation2], %s284
        %p286 = pneg %p45
        %p287 = pneg %p42
        %p288 = pneg %p66
        %p289 = pneg %p63
        %p290 = pneg %p87
        %p291 = pneg %p84
        %p292 = pneg %p108
        %p293 = pneg %p105
        %p294 = pneg %p129
        %p295 = pneg %p126
        %p296 = pneg %p150
        %p297 = pneg %p147
        %p298 = pneg %p176
        %p299 = pneg %p173
        %s300 = sand.u32 %s163, 1
        %s301 = scalar_lea.sflag [#allocation4], %s300
        %s302 = sand.u32 %s163, 1
        %s303 = smul.addr %s302, 128
        %s304 = scalar_lea.vmem [#allocation8], %s303
        %s305 = smul.u32 8, %s24
        %s306 = smul.u32 8, %s24
        %v308 = vld [vmem:[%s265] sm:$0xff]
        %v309 = vld [vmem:[%s265 + $0x8] sm:$0xff]
        %v310 = vld [vmem:[%s265 + $0x10] sm:$0xff]
        %v311 = vld [vmem:[%s265 + $0x18] sm:$0xff]
        %v312 = vld [vmem:[%s265 + $0x20] sm:$0xff]
        %v313 = vld [vmem:[%s265 + $0x28] sm:$0xff]
        %v314 = vld [vmem:[%s265 + $0x30] sm:$0xff]
        %v315 = vld [vmem:[%s265 + $0x38] sm:$0xff]
        %v316 = vpack.c.bf16 %v308, %v308
        %v317 = vpack.c.bf16 %v309, %v309
        %v318 = vpack.c.bf16 %v310, %v310
        %v319 = vpack.c.bf16 %v311, %v311
        %v320 = vpack.c.bf16 %v312, %v312
        %v321 = vpack.c.bf16 %v313, %v313
        %v322 = vpack.c.bf16 %v314, %v314
        %v323 = vpack.c.bf16 %v315, %v315
        %v324 = vld [vmem:[%s1] sm:$0xf]
        %v325 = vld [vmem:[%s1 + $0x4] sm:$0xf]
        %v328 = vunpack.c.l.b16 %v324
        %v329 = vunpack.c.l.b16 %v325
        %v330 = vpack.c.b16 %v329, %v328
        %vm331 = vcmask 64512
        %v333 = vsel %vm331, %v330, 0
        %vm335 = vcmask 1043456
        %v337 = vsel %vm335, %v316, 0
        %339 = vmatpush.bf16.msra.mxu0 0
        %340 = vmatpush.bf16.msra.mxu0 0
        %341 = vmatpush.bf16.msra.mxu0 0
        %342 = vmatpush.bf16.msra.mxu0 0
        %343 = vmatpush.bf16.msra.mxu0 0
        %344 = vmatpush.bf16.msra.mxu0 0
        %345 = vmatpush.bf16.msra.mxu0 0
        %346 = vmatpush.bf16.msra.mxu0 %v337
        %347 = vmatmul.bf16.gmra.mxu0 %v333
        %v348 = vpop.f32.mrf.mxu0
        %v349 = vadd.f32 0.0, %v348
        %v350 = vpop.f32.mrf.mxu0
        %v351 = vadd.f32 0.0, %v350
        %352 = vdwg.mxu0
        %v354 = vsel %vm335, %v317, 0
        %356 = vmatpush.bf16.msra.mxu0 0
        %357 = vmatpush.bf16.msra.mxu0 0
        %358 = vmatpush.bf16.msra.mxu0 0
        %359 = vmatpush.bf16.msra.mxu0 0
        %360 = vmatpush.bf16.msra.mxu0 0
        %361 = vmatpush.bf16.msra.mxu0 0
        %362 = vmatpush.bf16.msra.mxu0 0
        %363 = vmatpush.bf16.msra.mxu0 %v354
        %364 = vmatmul.bf16.gmra.mxu0 %v333
        %v365 = vpop.f32.mrf.mxu0
        %v366 = vadd.f32 0.0, %v365
        %v367 = vpop.f32.mrf.mxu0
        %v368 = vadd.f32 0.0, %v367
        %369 = vdwg.mxu0
        %v371 = vsel %vm335, %v318, 0
        %373 = vmatpush.bf16.msra.mxu0 0
        %374 = vmatpush.bf16.msra.mxu0 0
        %375 = vmatpush.bf16.msra.mxu0 0
        %376 = vmatpush.bf16.msra.mxu0 0
        %377 = vmatpush.bf16.msra.mxu0 0
        %378 = vmatpush.bf16.msra.mxu0 0
        %379 = vmatpush.bf16.msra.mxu0 0
        %380 = vmatpush.bf16.msra.mxu0 %v371
        %381 = vmatmul.bf16.gmra.mxu0 %v333
        %v382 = vpop.f32.mrf.mxu0
        %v383 = vadd.f32 0.0, %v382
        %v384 = vpop.f32.mrf.mxu0
        %v385 = vadd.f32 0.0, %v384
        %386 = vdwg.mxu0
        %v388 = vsel %vm335, %v319, 0
        %390 = vmatpush.bf16.msra.mxu0 0
        %391 = vmatpush.bf16.msra.mxu0 0
        %392 = vmatpush.bf16.msra.mxu0 0
        %393 = vmatpush.bf16.msra.mxu0 0
        %394 = vmatpush.bf16.msra.mxu0 0
        %395 = vmatpush.bf16.msra.mxu0 0
        %396 = vmatpush.bf16.msra.mxu0 0
        %397 = vmatpush.bf16.msra.mxu0 %v388
        %398 = vmatmul.bf16.gmra.mxu0 %v333
        %v399 = vpop.f32.mrf.mxu0
        %v400 = vadd.f32 0.0, %v399
        %v401 = vpop.f32.mrf.mxu0
        %v402 = vadd.f32 0.0, %v401
        %403 = vdwg.mxu0
        %v405 = vsel %vm335, %v320, 0
        %407 = vmatpush.bf16.msra.mxu0 0
        %408 = vmatpush.bf16.msra.mxu0 0
        %409 = vmatpush.bf16.msra.mxu0 0
        %410 = vmatpush.bf16.msra.mxu0 0
        %411 = vmatpush.bf16.msra.mxu0 0
        %412 = vmatpush.bf16.msra.mxu0 0
        %413 = vmatpush.bf16.msra.mxu0 0
        %414 = vmatpush.bf16.msra.mxu0 %v405
        %415 = vmatmul.bf16.gmra.mxu0 %v333
        %v416 = vpop.f32.mrf.mxu0
        %v417 = vadd.f32 0.0, %v416
        %v418 = vpop.f32.mrf.mxu0
        %v419 = vadd.f32 0.0, %v418
        %420 = vdwg.mxu0
        %v422 = vsel %vm335, %v321, 0
        %424 = vmatpush.bf16.msra.mxu0 0
        %425 = vmatpush.bf16.msra.mxu0 0
        %426 = vmatpush.bf16.msra.mxu0 0
        %427 = vmatpush.bf16.msra.mxu0 0
        %428 = vmatpush.bf16.msra.mxu0 0
        %429 = vmatpush.bf16.msra.mxu0 0
        %430 = vmatpush.bf16.msra.mxu0 0
        %431 = vmatpush.bf16.msra.mxu0 %v422
        %432 = vmatmul.bf16.gmra.mxu0 %v333
        %v433 = vpop.f32.mrf.mxu0
        %v434 = vadd.f32 0.0, %v433
        %v435 = vpop.f32.mrf.mxu0
        %v436 = vadd.f32 0.0, %v435
        %437 = vdwg.mxu0
        %v439 = vsel %vm335, %v322, 0
        %441 = vmatpush.bf16.msra.mxu0 0
        %442 = vmatpush.bf16.msra.mxu0 0
        %443 = vmatpush.bf16.msra.mxu0 0
        %444 = vmatpush.bf16.msra.mxu0 0
        %445 = vmatpush.bf16.msra.mxu0 0
        %446 = vmatpush.bf16.msra.mxu0 0
        %447 = vmatpush.bf16.msra.mxu0 0
        %448 = vmatpush.bf16.msra.mxu0 %v439
        %449 = vmatmul.bf16.gmra.mxu0 %v333
        %v450 = vpop.f32.mrf.mxu0
        %v451 = vadd.f32 0.0, %v450
        %v452 = vpop.f32.mrf.mxu0
        %v453 = vadd.f32 0.0, %v452
        %454 = vdwg.mxu0
        %v456 = vsel %vm335, %v323, 0
        %458 = vmatpush.bf16.msra.mxu0 0
        %459 = vmatpush.bf16.msra.mxu0 0
        %460 = vmatpush.bf16.msra.mxu0 0
        %461 = vmatpush.bf16.msra.mxu0 0
        %462 = vmatpush.bf16.msra.mxu0 0
        %463 = vmatpush.bf16.msra.mxu0 0
        %464 = vmatpush.bf16.msra.mxu0 0
        %465 = vmatpush.bf16.msra.mxu0 %v456
        %466 = vmatmul.bf16.gmra.mxu0 %v333
        %v467 = vpop.f32.mrf.mxu0
        %v468 = vadd.f32 0.0, %v467
        %v469 = vpop.f32.mrf.mxu0
        %v470 = vadd.f32 0.0, %v469
        %471 = vdwg.mxu0
        %v472 = vpack.c.bf16 %v349, %v349
        %v473 = vpack.c.bf16 %v351, %v351
        %v474 = vpack.c.bf16 %v366, %v366
        %v475 = vpack.c.bf16 %v368, %v368
        %v476 = vpack.c.bf16 %v383, %v383
        %v477 = vpack.c.bf16 %v385, %v385
        %v478 = vpack.c.bf16 %v400, %v400
        %v479 = vpack.c.bf16 %v402, %v402
        %v480 = vpack.c.bf16 %v417, %v417
        %v481 = vpack.c.bf16 %v419, %v419
        %v482 = vpack.c.bf16 %v434, %v434
        %v483 = vpack.c.bf16 %v436, %v436
        %v484 = vpack.c.bf16 %v451, %v451
        %v485 = vpack.c.bf16 %v453, %v453
        %v486 = vpack.c.bf16 %v468, %v468
        %v487 = vpack.c.bf16 %v470, %v470
        %v488 = vld [vmem:[#allocation5] sm:$0xf]
        %v489 = vld [vmem:[#allocation5 + $0x4] sm:$0xf]
        %v490 = vld [vmem:[#allocation5 + $0x8] sm:$0xf]
        %v491 = vld [vmem:[#allocation5 + $0xc] sm:$0xf]
        %v508 = vunpack.c.l.b16 %v472
        %v509 = vunpack.c.l.b16 %v473
        %v510 = vunpack.c.l.b16 %v474
        %v511 = vunpack.c.l.b16 %v475
        %v512 = vunpack.c.l.b16 %v476
        %v513 = vunpack.c.l.b16 %v477
        %v514 = vunpack.c.l.b16 %v478
        %v515 = vunpack.c.l.b16 %v479
        %v516 = vunpack.c.l.b16 %v480
        %v517 = vunpack.c.l.b16 %v481
        %v518 = vunpack.c.l.b16 %v482
        %v519 = vunpack.c.l.b16 %v483
        %v520 = vunpack.c.l.b16 %v484
        %v521 = vunpack.c.l.b16 %v485
        %v522 = vunpack.c.l.b16 %v486
        %v523 = vunpack.c.l.b16 %v487
        %v524 = vpack.c.b16 %v509, %v508
        %v525 = vpack.c.b16 %v511, %v510
        %v526 = vpack.c.b16 %v513, %v512
        %v527 = vpack.c.b16 %v515, %v514
        %v528 = vpack.c.b16 %v517, %v516
        %v529 = vpack.c.b16 %v519, %v518
        %v530 = vpack.c.b16 %v521, %v520
        %v531 = vpack.c.b16 %v523, %v522
        %v536 = vunpack.c.l.b16 %v488
        %v537 = vunpack.c.l.b16 %v489
        %v538 = vunpack.c.l.b16 %v490
        %v539 = vunpack.c.l.b16 %v491
        %v540 = vpack.c.b16 %v537, %v536
        %v541 = vpack.c.b16 %v539, %v538
        %vm544 = vcmask 261120
        %v546 = vsel %vm544, %v524, 0
        %v549 = vsel %vm544, %v525, 0
        %v552 = vsel %vm544, %v526, 0
        %v555 = vsel %vm544, %v527, 0
        %v558 = vsel %vm544, %v528, 0
        %v561 = vsel %vm544, %v529, 0
        %v564 = vsel %vm544, %v530, 0
        %v567 = vsel %vm544, %v531, 0
        %569 = vmatpush.bf16.msra.mxu0 0
        %570 = vmatpush.bf16.msra.mxu0 0
        %571 = vmatpush.bf16.msra.mxu0 0
        %572 = vmatpush.bf16.msra.mxu0 0
        %573 = vmatpush.bf16.msra.mxu0 0
        %574 = vmatpush.bf16.msra.mxu0 0
        %575 = vmatpush.bf16.msra.mxu0 %v541
        %576 = vmatpush.bf16.msra.mxu0 %v540
        %577 = vmatmul.bf16.gmra.mxu0 %v546
        %v578 = vpop.f32.mrf.mxu0
        %v579 = vadd.f32 0.0, %v578
        %v580 = vpop.f32.mrf.mxu0
        %v581 = vadd.f32 0.0, %v580
        %582 = vmatmul.bf16.gmra.mxu0 %v549
        %v583 = vpop.f32.mrf.mxu0
        %v584 = vadd.f32 0.0, %v583
        %v585 = vpop.f32.mrf.mxu0
        %v586 = vadd.f32 0.0, %v585
        %587 = vmatmul.bf16.gmra.mxu0 %v552
        %v588 = vpop.f32.mrf.mxu0
        %v589 = vadd.f32 0.0, %v588
        %v590 = vpop.f32.mrf.mxu0
        %v591 = vadd.f32 0.0, %v590
        %592 = vmatmul.bf16.gmra.mxu0 %v555
        %v593 = vpop.f32.mrf.mxu0
        %v594 = vadd.f32 0.0, %v593
        %v595 = vpop.f32.mrf.mxu0
        %v596 = vadd.f32 0.0, %v595
        %597 = vmatmul.bf16.gmra.mxu0 %v558
        %v598 = vpop.f32.mrf.mxu0
        %v599 = vadd.f32 0.0, %v598
        %v600 = vpop.f32.mrf.mxu0
        %v601 = vadd.f32 0.0, %v600
        %602 = vmatmul.bf16.gmra.mxu0 %v561
        %v603 = vpop.f32.mrf.mxu0
        %v604 = vadd.f32 0.0, %v603
        %v605 = vpop.f32.mrf.mxu0
        %v606 = vadd.f32 0.0, %v605
        %607 = vmatmul.bf16.gmra.mxu0 %v564
        %v608 = vpop.f32.mrf.mxu0
        %v609 = vadd.f32 0.0, %v608
        %v610 = vpop.f32.mrf.mxu0
        %v611 = vadd.f32 0.0, %v610
        %612 = vmatmul.bf16.gmra.mxu0 %v567
        %v613 = vpop.f32.mrf.mxu0
        %v614 = vadd.f32 0.0, %v613
        %v615 = vpop.f32.mrf.mxu0
        %v616 = vadd.f32 0.0, %v615
        %617 = vdwg.mxu0
        %v618 = vld [vmem:[#allocation7] sm:$0xff]
        %v619 = vld [vmem:[#allocation7 + $0x8] sm:$0xff]
        %v620 = vadd.f32 %v579, %v618
        %v621 = vadd.f32 %v581, %v619
        %v622 = vadd.f32 %v584, %v618
        %v623 = vadd.f32 %v586, %v619
        %v624 = vadd.f32 %v589, %v618
        %v625 = vadd.f32 %v591, %v619
        %v626 = vadd.f32 %v594, %v618
        %v627 = vadd.f32 %v596, %v619
        %v628 = vadd.f32 %v599, %v618
        %v629 = vadd.f32 %v601, %v619
        %v630 = vadd.f32 %v604, %v618
        %v631 = vadd.f32 %v606, %v619
        %v632 = vadd.f32 %v609, %v618
        %v633 = vadd.f32 %v611, %v619
        %v634 = vadd.f32 %v614, %v618
        %v635 = vadd.f32 %v616, %v619
        %636 = vadd.xlane.f32.xlu0 %v620
        %v637 = vpop.xlane.xlu0 %636
        %638 = vadd.xlane.f32.xlu0 %v621
        %v639 = vpop.xlane.xlu0 %638
        %640 = vadd.xlane.f32.xlu0 %v622
        %v641 = vpop.xlane.xlu0 %640
        %642 = vadd.xlane.f32.xlu0 %v623
        %v643 = vpop.xlane.xlu0 %642
        %644 = vadd.xlane.f32.xlu0 %v624
        %v645 = vpop.xlane.xlu0 %644
        %646 = vadd.xlane.f32.xlu0 %v625
        %v647 = vpop.xlane.xlu0 %646
        %648 = vadd.xlane.f32.xlu0 %v626
        %v649 = vpop.xlane.xlu0 %648
        %650 = vadd.xlane.f32.xlu0 %v627
        %v651 = vpop.xlane.xlu0 %650
        %652 = vadd.xlane.f32.xlu0 %v628
        %v653 = vpop.xlane.xlu0 %652
        %654 = vadd.xlane.f32.xlu0 %v629
        %v655 = vpop.xlane.xlu0 %654
        %656 = vadd.xlane.f32.xlu0 %v630
        %v657 = vpop.xlane.xlu0 %656
        %658 = vadd.xlane.f32.xlu0 %v631
        %v659 = vpop.xlane.xlu0 %658
        %660 = vadd.xlane.f32.xlu0 %v632
        %v661 = vpop.xlane.xlu0 %660
        %662 = vadd.xlane.f32.xlu0 %v633
        %v663 = vpop.xlane.xlu0 %662
        %664 = vadd.xlane.f32.xlu0 %v634
        %v665 = vpop.xlane.xlu0 %664
        %666 = vadd.xlane.f32.xlu0 %v635
        %v667 = vpop.xlane.xlu0 %666
        %v668 = vrcp.pop 128.0
        %v669 = vmul.f32 128.0, %v668
        %v670 = vsub.f32 1.0, %v669
        %v671 = vmul.f32 %v668, %v670
        %v672 = vadd.f32 %v668, %v671
        %vm673 = vweird.f32 %v668
        %v674 = vsel %vm673, %v668, %v672
        %v675 = vmul.f32 %v637, %v674
        %v676 = vmul.f32 %v639, %v674
        %v677 = vmul.f32 %v641, %v674
        %v678 = vmul.f32 %v643, %v674
        %v679 = vmul.f32 %v645, %v674
        %v680 = vmul.f32 %v647, %v674
        %v681 = vmul.f32 %v649, %v674
        %v682 = vmul.f32 %v651, %v674
        %v683 = vmul.f32 %v653, %v674
        %v684 = vmul.f32 %v655, %v674
        %v685 = vmul.f32 %v657, %v674
        %v686 = vmul.f32 %v659, %v674
        %v687 = vmul.f32 %v661, %v674
        %v688 = vmul.f32 %v663, %v674
        %v689 = vmul.f32 %v665, %v674
        %v690 = vmul.f32 %v667, %v674
        %v691 = vmul.f32 %v620, %v620
        %v692 = vmul.f32 %v621, %v621
        %v693 = vmul.f32 %v622, %v622
        %v694 = vmul.f32 %v623, %v623
        %v695 = vmul.f32 %v624, %v624
        %v696 = vmul.f32 %v625, %v625
        %v697 = vmul.f32 %v626, %v626
        %v698 = vmul.f32 %v627, %v627
        %v699 = vmul.f32 %v628, %v628
        %v700 = vmul.f32 %v629, %v629
        %v701 = vmul.f32 %v630, %v630
        %v702 = vmul.f32 %v631, %v631
        %v703 = vmul.f32 %v632, %v632
        %v704 = vmul.f32 %v633, %v633
        %v705 = vmul.f32 %v634, %v634
        %v706 = vmul.f32 %v635, %v635
        %707 = vadd.xlane.f32.xlu0 %v691
        %v708 = vpop.xlane.xlu0 %707
        %709 = vadd.xlane.f32.xlu0 %v692
        %v710 = vpop.xlane.xlu0 %709
        %711 = vadd.xlane.f32.xlu0 %v693
        %v712 = vpop.xlane.xlu0 %711
        %713 = vadd.xlane.f32.xlu0 %v694
        %v714 = vpop.xlane.xlu0 %713
        %715 = vadd.xlane.f32.xlu0 %v695
        %v716 = vpop.xlane.xlu0 %715
        %717 = vadd.xlane.f32.xlu0 %v696
        %v718 = vpop.xlane.xlu0 %717
        %719 = vadd.xlane.f32.xlu0 %v697
        %v720 = vpop.xlane.xlu0 %719
        %721 = vadd.xlane.f32.xlu0 %v698
        %v722 = vpop.xlane.xlu0 %721
        %723 = vadd.xlane.f32.xlu0 %v699
        %v724 = vpop.xlane.xlu0 %723
        %725 = vadd.xlane.f32.xlu0 %v700
        %v726 = vpop.xlane.xlu0 %725
        %727 = vadd.xlane.f32.xlu0 %v701
        %v728 = vpop.xlane.xlu0 %727
        %729 = vadd.xlane.f32.xlu0 %v702
        %v730 = vpop.xlane.xlu0 %729
        %731 = vadd.xlane.f32.xlu0 %v703
        %v732 = vpop.xlane.xlu0 %731
        %733 = vadd.xlane.f32.xlu0 %v704
        %v734 = vpop.xlane.xlu0 %733
        %735 = vadd.xlane.f32.xlu0 %v705
        %v736 = vpop.xlane.xlu0 %735
        %737 = vadd.xlane.f32.xlu0 %v706
        %v738 = vpop.xlane.xlu0 %737
        %v739 = vmul.f32 %v708, %v674
        %v740 = vmul.f32 %v710, %v674
        %v741 = vmul.f32 %v712, %v674
        %v742 = vmul.f32 %v714, %v674
        %v743 = vmul.f32 %v716, %v674
        %v744 = vmul.f32 %v718, %v674
        %v745 = vmul.f32 %v720, %v674
        %v746 = vmul.f32 %v722, %v674
        %v747 = vmul.f32 %v724, %v674
        %v748 = vmul.f32 %v726, %v674
        %v749 = vmul.f32 %v728, %v674
        %v750 = vmul.f32 %v730, %v674
        %v751 = vmul.f32 %v732, %v674
        %v752 = vmul.f32 %v734, %v674
        %v753 = vmul.f32 %v736, %v674
        %v754 = vmul.f32 %v738, %v674
        %v755 = vmul.f32 %v675, %v675
        %v756 = vmul.f32 %v676, %v676
        %v757 = vmul.f32 %v677, %v677
        %v758 = vmul.f32 %v678, %v678
        %v759 = vmul.f32 %v679, %v679
        %v760 = vmul.f32 %v680, %v680
        %v761 = vmul.f32 %v681, %v681
        %v762 = vmul.f32 %v682, %v682
        %v763 = vmul.f32 %v683, %v683
        %v764 = vmul.f32 %v684, %v684
        %v765 = vmul.f32 %v685, %v685
        %v766 = vmul.f32 %v686, %v686
        %v767 = vmul.f32 %v687, %v687
        %v768 = vmul.f32 %v688, %v688
        %v769 = vmul.f32 %v689, %v689
        %v770 = vmul.f32 %v690, %v690
        %v771 = vsub.f32 %v739, %v755
        %v772 = vsub.f32 %v740, %v756
        %v773 = vsub.f32 %v741, %v757
        %v774 = vsub.f32 %v742, %v758
        %v775 = vsub.f32 %v743, %v759
        %v776 = vsub.f32 %v744, %v760
        %v777 = vsub.f32 %v745, %v761
        %v778 = vsub.f32 %v746, %v762
        %v779 = vsub.f32 %v747, %v763
        %v780 = vsub.f32 %v748, %v764
        %v781 = vsub.f32 %v749, %v765
        %v782 = vsub.f32 %v750, %v766
        %v783 = vsub.f32 %v751, %v767
        %v784 = vsub.f32 %v752, %v768
        %v785 = vsub.f32 %v753, %v769
        %v786 = vsub.f32 %v754, %v770
        %v787 = vmax.f32 %v771, 0.0
        %v788 = vmax.f32 %v772, 0.0
        %v789 = vmax.f32 %v773, 0.0
        %v790 = vmax.f32 %v774, 0.0
        %v791 = vmax.f32 %v775, 0.0
        %v792 = vmax.f32 %v776, 0.0
        %v793 = vmax.f32 %v777, 0.0
        %v794 = vmax.f32 %v778, 0.0
        %v795 = vmax.f32 %v779, 0.0
        %v796 = vmax.f32 %v780, 0.0
        %v797 = vmax.f32 %v781, 0.0
        %v798 = vmax.f32 %v782, 0.0
        %v799 = vmax.f32 %v783, 0.0
        %v800 = vmax.f32 %v784, 0.0
        %v801 = vmax.f32 %v785, 0.0
        %v802 = vmax.f32 %v786, 0.0
        %v803 = vsub.f32 %v620, %v675
        %v804 = vsub.f32 %v621, %v676
        %v805 = vsub.f32 %v622, %v677
        %v806 = vsub.f32 %v623, %v678
        %v807 = vsub.f32 %v624, %v679
        %v808 = vsub.f32 %v625, %v680
        %v809 = vsub.f32 %v626, %v681
        %v810 = vsub.f32 %v627, %v682
        %v811 = vsub.f32 %v628, %v683
        %v812 = vsub.f32 %v629, %v684
        %v813 = vsub.f32 %v630, %v685
        %v814 = vsub.f32 %v631, %v686
        %v815 = vsub.f32 %v632, %v687
        %v816 = vsub.f32 %v633, %v688
        %v817 = vsub.f32 %v634, %v689
        %v818 = vsub.f32 %v635, %v690
        %v819 = vadd.f32 %v787, 1e-05
        %v820 = vadd.f32 %v788, 1e-05
        %v821 = vadd.f32 %v789, 1e-05
        %v822 = vadd.f32 %v790, 1e-05
        %v823 = vadd.f32 %v791, 1e-05
        %v824 = vadd.f32 %v792, 1e-05
        %v825 = vadd.f32 %v793, 1e-05
        %v826 = vadd.f32 %v794, 1e-05
        %v827 = vadd.f32 %v795, 1e-05
        %v828 = vadd.f32 %v796, 1e-05
        %v829 = vadd.f32 %v797, 1e-05
        %v830 = vadd.f32 %v798, 1e-05
        %v831 = vadd.f32 %v799, 1e-05
        %v832 = vadd.f32 %v800, 1e-05
        %v833 = vadd.f32 %v801, 1e-05
        %v834 = vadd.f32 %v802, 1e-05
        %v835 = vrsqrt.pop %v819
        %v836 = vmul.f32 %v835, %v819
        %v837 = vmul.f32 %v836, %v835
        %v838 = vmul.f32 0.5, %v837
        %v839 = vsub.f32 1.5, %v838
        %v840 = vmul.f32 %v835, %v839
        %vm841 = vweird.f32 %v819
        %vm842 = vweird.f32 %v835
        %vm843 = vmor %vm841, %vm842
        %v844 = vsel %vm843, %v835, %v840
        %v845 = vrsqrt.pop %v820
        %v846 = vmul.f32 %v845, %v820
        %v847 = vmul.f32 %v846, %v845
        %v848 = vmul.f32 0.5, %v847
        %v849 = vsub.f32 1.5, %v848
        %v850 = vmul.f32 %v845, %v849
        %vm851 = vweird.f32 %v820
        %vm852 = vweird.f32 %v845
        %vm853 = vmor %vm851, %vm852
        %v854 = vsel %vm853, %v845, %v850
        %v855 = vrsqrt.pop %v821
        %v856 = vmul.f32 %v855, %v821
        %v857 = vmul.f32 %v856, %v855
        %v858 = vmul.f32 0.5, %v857
        %v859 = vsub.f32 1.5, %v858
        %v860 = vmul.f32 %v855, %v859
        %vm861 = vweird.f32 %v821
        %vm862 = vweird.f32 %v855
        %vm863 = vmor %vm861, %vm862
        %v864 = vsel %vm863, %v855, %v860
        %v865 = vrsqrt.pop %v822
        %v866 = vmul.f32 %v865, %v822
        %v867 = vmul.f32 %v866, %v865
        %v868 = vmul.f32 0.5, %v867
        %v869 = vsub.f32 1.5, %v868
        %v870 = vmul.f32 %v865, %v869
        %vm871 = vweird.f32 %v822
        %vm872 = vweird.f32 %v865
        %vm873 = vmor %vm871, %vm872
        %v874 = vsel %vm873, %v865, %v870
        %v875 = vrsqrt.pop %v823
        %v876 = vmul.f32 %v875, %v823
        %v877 = vmul.f32 %v876, %v875
        %v878 = vmul.f32 0.5, %v877
        %v879 = vsub.f32 1.5, %v878
        %v880 = vmul.f32 %v875, %v879
        %vm881 = vweird.f32 %v823
        %vm882 = vweird.f32 %v875
        %vm883 = vmor %vm881, %vm882
        %v884 = vsel %vm883, %v875, %v880
        %v885 = vrsqrt.pop %v824
        %v886 = vmul.f32 %v885, %v824
        %v887 = vmul.f32 %v886, %v885
        %v888 = vmul.f32 0.5, %v887
        %v889 = vsub.f32 1.5, %v888
        %v890 = vmul.f32 %v885, %v889
        %vm891 = vweird.f32 %v824
        %vm892 = vweird.f32 %v885
        %vm893 = vmor %vm891, %vm892
        %v894 = vsel %vm893, %v885, %v890
        %v895 = vrsqrt.pop %v825
        %v896 = vmul.f32 %v895, %v825
        %v897 = vmul.f32 %v896, %v895
        %v898 = vmul.f32 0.5, %v897
        %v899 = vsub.f32 1.5, %v898
        %v900 = vmul.f32 %v895, %v899
        %vm901 = vweird.f32 %v825
        %vm902 = vweird.f32 %v895
        %vm903 = vmor %vm901, %vm902
        %v904 = vsel %vm903, %v895, %v900
        %v905 = vrsqrt.pop %v826
        %v906 = vmul.f32 %v905, %v826
        %v907 = vmul.f32 %v906, %v905
        %v908 = vmul.f32 0.5, %v907
        %v909 = vsub.f32 1.5, %v908
        %v910 = vmul.f32 %v905, %v909
        %vm911 = vweird.f32 %v826
        %vm912 = vweird.f32 %v905
        %vm913 = vmor %vm911, %vm912
        %v914 = vsel %vm913, %v905, %v910
        %v915 = vrsqrt.pop %v827
        %v916 = vmul.f32 %v915, %v827
        %v917 = vmul.f32 %v916, %v915
        %v918 = vmul.f32 0.5, %v917
        %v919 = vsub.f32 1.5, %v918
        %v920 = vmul.f32 %v915, %v919
        %vm921 = vweird.f32 %v827
        %vm922 = vweird.f32 %v915
        %vm923 = vmor %vm921, %vm922
        %v924 = vsel %vm923, %v915, %v920
        %v925 = vrsqrt.pop %v828
        %v926 = vmul.f32 %v925, %v828
        %v927 = vmul.f32 %v926, %v925
        %v928 = vmul.f32 0.5, %v927
        %v929 = vsub.f32 1.5, %v928
        %v930 = vmul.f32 %v925, %v929
        %vm931 = vweird.f32 %v828
        %vm932 = vweird.f32 %v925
        %vm933 = vmor %vm931, %vm932
        %v934 = vsel %vm933, %v925, %v930
        %v935 = vrsqrt.pop %v829
        %v936 = vmul.f32 %v935, %v829
        %v937 = vmul.f32 %v936, %v935
        %v938 = vmul.f32 0.5, %v937
        %v939 = vsub.f32 1.5, %v938
        %v940 = vmul.f32 %v935, %v939
        %vm941 = vweird.f32 %v829
        %vm942 = vweird.f32 %v935
        %vm943 = vmor %vm941, %vm942
        %v944 = vsel %vm943, %v935, %v940
        %v945 = vrsqrt.pop %v830
        %v946 = vmul.f32 %v945, %v830
        %v947 = vmul.f32 %v946, %v945
        %v948 = vmul.f32 0.5, %v947
        %v949 = vsub.f32 1.5, %v948
        %v950 = vmul.f32 %v945, %v949
        %vm951 = vweird.f32 %v830
        %vm952 = vweird.f32 %v945
        %vm953 = vmor %vm951, %vm952
        %v954 = vsel %vm953, %v945, %v950
        %v955 = vrsqrt.pop %v831
        %v956 = vmul.f32 %v955, %v831
        %v957 = vmul.f32 %v956, %v955
        %v958 = vmul.f32 0.5, %v957
        %v959 = vsub.f32 1.5, %v958
        %v960 = vmul.f32 %v955, %v959
        %vm961 = vweird.f32 %v831
        %vm962 = vweird.f32 %v955
        %vm963 = vmor %vm961, %vm962
        %v964 = vsel %vm963, %v955, %v960
        %v965 = vrsqrt.pop %v832
        %v966 = vmul.f32 %v965, %v832
        %v967 = vmul.f32 %v966, %v965
        %v968 = vmul.f32 0.5, %v967
        %v969 = vsub.f32 1.5, %v968
        %v970 = vmul.f32 %v965, %v969
        %vm971 = vweird.f32 %v832
        %vm972 = vweird.f32 %v965
        %vm973 = vmor %vm971, %vm972
        %v974 = vsel %vm973, %v965, %v970
        %v975 = vrsqrt.pop %v833
        %v976 = vmul.f32 %v975, %v833
        %v977 = vmul.f32 %v976, %v975
        %v978 = vmul.f32 0.5, %v977
        %v979 = vsub.f32 1.5, %v978
        %v980 = vmul.f32 %v975, %v979
        %vm981 = vweird.f32 %v833
        %vm982 = vweird.f32 %v975
        %vm983 = vmor %vm981, %vm982
        %v984 = vsel %vm983, %v975, %v980
        %v985 = vrsqrt.pop %v834
        %v986 = vmul.f32 %v985, %v834
        %v987 = vmul.f32 %v986, %v985
        %v988 = vmul.f32 0.5, %v987
        %v989 = vsub.f32 1.5, %v988
        %v990 = vmul.f32 %v985, %v989
        %vm991 = vweird.f32 %v834
        %vm992 = vweird.f32 %v985
        %vm993 = vmor %vm991, %vm992
        %v994 = vsel %vm993, %v985, %v990
        %v995 = vmul.f32 %v803, %v844
        %v996 = vmul.f32 %v804, %v854
        %v997 = vmul.f32 %v805, %v864
        %v998 = vmul.f32 %v806, %v874
        %v999 = vmul.f32 %v807, %v884
        %v1000 = vmul.f32 %v808, %v894
        %v1001 = vmul.f32 %v809, %v904
        %v1002 = vmul.f32 %v810, %v914
        %v1003 = vmul.f32 %v811, %v924
        %v1004 = vmul.f32 %v812, %v934
        %v1005 = vmul.f32 %v813, %v944
        %v1006 = vmul.f32 %v814, %v954
        %v1007 = vmul.f32 %v815, %v964
        %v1008 = vmul.f32 %v816, %v974
        %v1009 = vmul.f32 %v817, %v984
        %v1010 = vmul.f32 %v818, %v994
        %v1011 = vld [vmem:[%s4] sm:$0x1]
        %v1013 = vperm.slane %v1011, 0
        %v1015 = vmul.f32 %v995, %v1013
        %v1016 = vmul.f32 %v996, %v1013
        %v1017 = vmul.f32 %v997, %v1013
        %v1018 = vmul.f32 %v998, %v1013
        %v1019 = vmul.f32 %v999, %v1013
        %v1020 = vmul.f32 %v1000, %v1013
        %v1021 = vmul.f32 %v1001, %v1013
        %v1022 = vmul.f32 %v1002, %v1013
        %v1023 = vmul.f32 %v1003, %v1013
        %v1024 = vmul.f32 %v1004, %v1013
        %v1025 = vmul.f32 %v1005, %v1013
        %v1026 = vmul.f32 %v1006, %v1013
        %v1027 = vmul.f32 %v1007, %v1013
        %v1028 = vmul.f32 %v1008, %v1013
        %v1029 = vmul.f32 %v1009, %v1013
        %v1030 = vmul.f32 %v1010, %v1013
        %v1031 = vld [vmem:[%s5] sm:$0x1]
        %v1033 = vperm.slane %v1031, 0
        %v1035 = vadd.f32 %v1015, %v1033
        %v1036 = vadd.f32 %v1016, %v1033
        %v1037 = vadd.f32 %v1017, %v1033
        %v1038 = vadd.f32 %v1018, %v1033
        %v1039 = vadd.f32 %v1019, %v1033
        %v1040 = vadd.f32 %v1020, %v1033
        %v1041 = vadd.f32 %v1021, %v1033
        %v1042 = vadd.f32 %v1022, %v1033
        %v1043 = vadd.f32 %v1023, %v1033
        %v1044 = vadd.f32 %v1024, %v1033
        %v1045 = vadd.f32 %v1025, %v1033
        %v1046 = vadd.f32 %v1026, %v1033
        %v1047 = vadd.f32 %v1027, %v1033
        %v1048 = vadd.f32 %v1028, %v1033
        %v1049 = vadd.f32 %v1029, %v1033
        %v1050 = vadd.f32 %v1030, %v1033
        %1051 = vst [vmem:[%s304] sm:$0xff] %v1035
        %1052 = vst [vmem:[%s304 + $0x8] sm:$0xff] %v1036
        %1053 = vst [vmem:[%s304 + $0x10] sm:$0xff] %v1037
        %1054 = vst [vmem:[%s304 + $0x18] sm:$0xff] %v1038
        %1055 = vst [vmem:[%s304 + $0x20] sm:$0xff] %v1039
        %1056 = vst [vmem:[%s304 + $0x28] sm:$0xff] %v1040
        %1057 = vst [vmem:[%s304 + $0x30] sm:$0xff] %v1041
        %1058 = vst [vmem:[%s304 + $0x38] sm:$0xff] %v1042
        %1059 = vst [vmem:[%s304 + $0x40] sm:$0xff] %v1043
        %1060 = vst [vmem:[%s304 + $0x48] sm:$0xff] %v1044
        %1061 = vst [vmem:[%s304 + $0x50] sm:$0xff] %v1045
        %1062 = vst [vmem:[%s304 + $0x58] sm:$0xff] %v1046
        %1063 = vst [vmem:[%s304 + $0x60] sm:$0xff] %v1047
        %1064 = vst [vmem:[%s304 + $0x68] sm:$0xff] %v1048
        %1065 = vst [vmem:[%s304 + $0x70] sm:$0xff] %v1049
        %1066 = vst [vmem:[%s304 + $0x78] sm:$0xff] %v1050
        %s1067 = sand.u32 %s163, 1
        %s1068 = scalar_lea.sflag [#allocation4], %s1067
        %s1069 = sand.u32 %s163, 1
        %s1070 = smul.addr %s1069, 128
        %s1071 = scalar_lea.vmem [#allocation8], %s1070
        // Predicated region
        $region57: #{tpu_custom_call.1} parent=43 // pred_check
          %p1072 = pneg %p173
        $region58: #{tpu_custom_call.1} parent=43 // pred_check_branch
          %1074 = sbr.rel (%p1072) target = $region60
        $region59: #{tpu_custom_call.1} parent=43 // pred_region
          %s1075 = smul.u32 8, %s24
          %1077 = vsyncadd %s1068, 0
          %s1078 = smul.addr %s1075, 2
          %s1079 = smul.addr %s1078, 8
          %s1080 = scalar_lea.hbm %s6, %s1079
          %s1081 = sshll.u32 %s1071, 4
          %s1082 = int_to_ptr.vmem [resolvable:$true] %s1081
          %s1083 = sshll.u32 %s1080, 4
          %s1084 = int_to_ptr.hbm [resolvable:$true] %s1083
          %1089 = dma.vmem_to_hbm [thread:$0]  %s1082, 2048, %s1084, %s1068, 128, 128, 8
        $region60: #{tpu_custom_call.1} parent=43 // pred_fallthru
          _
      $region44: #{tpu_custom_call.1} parent=5 // pred_fallthru
        _
      %p1090 = scmp.le.s32.totalorder 2, %s19
      // Predicated region
      $region61: #{tpu_custom_call.1} parent=5 // pred_check
        %p1091 = pneg %p1090
      $region62: #{tpu_custom_call.1} parent=5 // pred_check_branch
        %1093 = sbr.rel (%p1091) target = $region64
      $region63: #{tpu_custom_call.1} parent=5 // pred_region
        %s1094 = ssub.s32 %s19, 2
        // Predicated region
        $region65: #{tpu_custom_call.1} parent=63 // pred_check
          %p1095 = pneg %p179
        $region66: #{tpu_custom_call.1} parent=63 // pred_check_branch
          %1097 = sbr.rel (%p1095) target = $region68
        $region67: #{tpu_custom_call.1} parent=63 // pred_region
          %s1098 = sand.u32 %s164, 1
          %s1099 = scalar_lea.sflag [#allocation4], %s1098
          %s1100 = sand.u32 %s164, 1
          %s1101 = smul.addr %s1100, 128
          %s1102 = scalar_lea.vmem [#allocation8], %s1101
          %1104 = dma.done %s1099, 2048
        $region68: #{tpu_custom_call.1} parent=63 // pred_fallthru
          _
      $region64: #{tpu_custom_call.1} parent=5 // pred_fallthru
        _
    $region6: #{tpu_custom_call.1} parent=1 // loop_footer
      %s23 = sadd.s32 1, %s19
    $region7: #{tpu_custom_call.1} parent=1 // loop_footer_branch
      %18 = sbr.rel target = $region3
    $region8: #{tpu_custom_call.1} parent=1 // loop_exit
      _
    %1105 = vsyncpa [#allocation3], 1
    %s1106 = scalar_lea.sflag [#allocation3], 1
    %1107 = vsyncpa %s1106, 1
    %1108 = vsyncpa [#allocation6], 1
    %1109 = vsyncpa [#allocation4], 1
    %s1110 = scalar_lea.sflag [#allocation4], 1
    %1111 = vsyncpa %s1110, 1

</llo_original>
